<compile_context>
chip_gen: v7x
topology: tpu7x:2x2x1
jax: 0.10.0
libtpu: 0.0.40
codegen_flags: <defaults>
</compile_context>

<pallas_src>
import jax
import jax.numpy as jnp
from jax.experimental import pallas as pl
from jax.experimental.pallas import tpu as pltpu

# Model dims (diabetes classifier): Linear(8,32) -> Linear(32,23) -> Linear(23,1)
IN_DIM, HID_DIM, MID_DIM, OUT_DIM = 8, 32, 23, 1

LANES = 128   # TPU lane width; every fused-buffer section is 128 lanes wide
HID_P = 128   # hidden dim zero-padded to one full lane tile
SUB = 8       # sublane alignment


def _round_up(n, m):
    return (n + m - 1) // m * m


# Row offsets inside the single fused parameter buffer.  Each section starts
# on an 8-row sublane boundary so the static slices below are tile-aligned.
R_W1 = 0                               # (IN_DIM, 128): cols[:HID_DIM] used
R_W2 = R_W1 + _round_up(IN_DIM, SUB)   # (HID_P, 128): rows[:HID_DIM], cols[:MID_DIM]
R_B1 = R_W2 + HID_P                    # 1 row: b1 in cols[:HID_DIM]
R_B2 = R_B1 + SUB                      # 1 row: b2 in cols[:MID_DIM]
R_W3 = R_B2 + SUB                      # 1 row: layer-3 weight in cols[:MID_DIM]
R_B3 = R_W3 + SUB                      # 1 row: b3 replicated across all 128 lanes
R_TOT = R_B3 + SUB                     # 168 rows * 128 lanes * 4 B = 84 KiB


def mlp_kernel(x_ref, p_ref, o_ref):
    x = x_ref[...]                                    # (TB, IN_DIM)
    w1 = p_ref[R_W1:R_W1 + IN_DIM, :]                 # (IN_DIM, 128)
    w2 = p_ref[R_W2:R_W2 + HID_P, :]                  # (128, 128)
    b1 = p_ref[R_B1:R_B1 + 1, :]                      # (1, 128)
    b2 = p_ref[R_B2:R_B2 + 1, :]                      # (1, 128)
    w3 = p_ref[R_W3:R_W3 + 1, :]                      # (1, 128) layer-3 weight row
    b3 = p_ref[R_B3:R_B3 + 1, :]                      # (1, 128) b3 lane-replicated

    # Layer 1: MXU matmul with f32 accumulation, bias, ReLU.
    h1 = jnp.maximum(jnp.dot(x, w1, preferred_element_type=jnp.float32) + b1, 0.0)
    # Layer 1.5 (padded cols/rows of w2 are zero, so result is exact).
    h2 = jnp.maximum(jnp.dot(h1, w2, preferred_element_type=jnp.float32) + b2, 0.0)
    # Layer 2 (out_features == 1): VPU multiply + cross-lane reduce instead of an
    # N=1 MXU matmul.  Adding the lane-replicated b3 row broadcasts the logit to
    # all 128 lanes -> unmasked, lane-dense output store.
    logit = jnp.sum(h2 * w3, axis=-1, keepdims=True) + b3   # (TB, 128)
    o_ref[...] = jax.nn.sigmoid(logit)


def pack_params(w1, b1, w2, b2, w3, b3):
    """Fuse all weights/biases into one lane-padded (R_TOT, 128) f32 buffer.

    w1: (IN, HID), w2: (HID, MID), w3: (MID, 1)  -- already (in, out) layout
    b1: (HID,), b2: (MID,), b3: (1,)
    """
    p = jnp.zeros((R_TOT, LANES), jnp.float32)
    p = p.at[R_W1:R_W1 + IN_DIM, :HID_DIM].set(w1)
    p = p.at[R_W2:R_W2 + HID_DIM, :MID_DIM].set(w2)
    p = p.at[R_B1, :HID_DIM].set(b1)
    p = p.at[R_B2, :MID_DIM].set(b2)
    p = p.at[R_W3, :MID_DIM].set(w3[:, 0])
    p = p.at[R_B3, :].set(b3[0])            # replicate scalar across all lanes
    return p


def mlp_forward(x, packed_params):
    """x: (B, IN_DIM) f32.  packed_params: (R_TOT, 128) from pack_params."""
    B = x.shape[0]
    TB = 256 if B >= 256 else SUB           # batch tile (multiple of 8 sublanes)
    Bp = _round_up(max(B, TB), TB)
    if Bp != B:
        x = jnp.pad(x, ((0, Bp - B), (0, 0)))

    grid = (Bp // TB,)
    flops = 2 * B * (IN_DIM * HID_DIM + HID_DIM * MID_DIM + MID_DIM * OUT_DIM)
    bytes_accessed = (Bp * IN_DIM + R_TOT * LANES + Bp * LANES) * 4

    out = pl.pallas_call(
        mlp_kernel,
        out_shape=jax.ShapeDtypeStruct((Bp, LANES), jnp.float32),
        grid=grid,
        in_specs=[
            # Batch tile of activations; last dim equals the full array dim.
            pl.BlockSpec((TB, IN_DIM), lambda i: (i, 0)),
            # Fused parameter slab: index_map is constant -> resident in VMEM,
            # DMA'd once, reused across every grid step.
            pl.BlockSpec((R_TOT, LANES), lambda i: (0, 0)),
        ],
        out_specs=pl.BlockSpec((TB, LANES), lambda i: (i, 0)),
        compiler_params=pltpu.CompilerParams(
            dimension_semantics=("parallel",)),
        cost_estimate=pl.CostEstimate(
            flops=flops, transcendentals=B, bytes_accessed=bytes_accessed),
    )(x, packed_params)

    # Every lane of a row holds the same sigmoid(logit); keep column 0.
    return out[:B, :OUT_DIM]


if __name__ == "__main__":
    # Diabetes dataset: 8 features, hidden=32, mid=23, binary output=1.
    B = 16

    key = jax.random.PRNGKey(0)
    k_x, k1, k2, k3 = jax.random.split(key, 4)
    x = jax.random.normal(k_x, (B, IN_DIM), jnp.float32)

    def linear_init(k, fan_in, fan_out):
        # PyTorch-style Linear init: U(-1/sqrt(fan_in), 1/sqrt(fan_in)),
        # weight stored pre-transposed as (in, out).
        kw, kb = jax.random.split(k)
        bound = 1.0 / (fan_in ** 0.5)
        w = jax.random.uniform(kw, (fan_in, fan_out), jnp.float32, -bound, bound)
        b = jax.random.uniform(kb, (fan_out,), jnp.float32, -bound, bound)
        return w, b

    w1, b1 = linear_init(k1, IN_DIM, HID_DIM)
    w2, b2 = linear_init(k2, HID_DIM, MID_DIM)
    w3, b3 = linear_init(k3, MID_DIM, OUT_DIM)

    packed = pack_params(w1, b1, w2, b2, w3, b3)

    y = jax.block_until_ready(mlp_forward(x, packed))

    # Pure-JAX reference (same math as the PyTorch module's forward).
    h1 = jnp.maximum(x @ w1 + b1, 0.0)
    h2 = jnp.maximum(h1 @ w2 + b2, 0.0)
    y_ref = jax.nn.sigmoid(h2 @ w3 + b3)

    assert y.shape == (B, OUT_DIM)
    assert jnp.allclose(y, y_ref, atol=1e-5, rtol=1e-5), "mismatch vs reference"

    print("KERNEL_OK")
</pallas_src>

<mosaic_0001>
module attributes {stable_mosaic.version = 11 : i64} {
  func.func @mlp_kernel(%arg0: i32, %arg1: memref<8x8xf32, #tpu.memory_space<vmem>>, %arg2: memref<168x128xf32, #tpu.memory_space<vmem>>, %arg3: memref<8x128xf32, #tpu.memory_space<vmem>>) attributes {dimension_semantics = [#tpu.dimension_semantics<parallel>], iteration_bounds = array<i64: 2>, scalar_prefetch = 0 : i64, scratch_operands = 0 : i64, tpu.core_type = #tpu.core_type<tc>, window_params = [{transform_indices = @transform_0, window_bounds = array<i64: 8, 8>}, {pipeline_mode = #tpu.pipeline_mode<synchronous>, transform_indices = @transform_1, window_bounds = array<i64: 168, 128>}, {transform_indices = @transform_2, window_bounds = array<i64: 8, 128>}]} {
    %c0 = arith.constant 0 : index
    %c0_0 = arith.constant 0 : index
    %0 = vector.load %arg1[%c0, %c0_0] : memref<8x8xf32, #tpu.memory_space<vmem>>, vector<8x8xf32>
    %c0_1 = arith.constant 0 : index
    %c0_2 = arith.constant 0 : index
    %1 = vector.load %arg2[%c0_1, %c0_2] : memref<168x128xf32, #tpu.memory_space<vmem>>, vector<8x128xf32>
    %c8 = arith.constant 8 : index
    %c0_3 = arith.constant 0 : index
    %2 = vector.load %arg2[%c8, %c0_3] : memref<168x128xf32, #tpu.memory_space<vmem>>, vector<128x128xf32>
    %c136 = arith.constant 136 : index
    %c0_4 = arith.constant 0 : index
    %3 = vector.load %arg2[%c136, %c0_4] : memref<168x128xf32, #tpu.memory_space<vmem>>, vector<1x128xf32>
    %c144 = arith.constant 144 : index
    %c0_5 = arith.constant 0 : index
    %4 = vector.load %arg2[%c144, %c0_5] : memref<168x128xf32, #tpu.memory_space<vmem>>, vector<1x128xf32>
    %c152 = arith.constant 152 : index
    %c0_6 = arith.constant 0 : index
    %5 = vector.load %arg2[%c152, %c0_6] : memref<168x128xf32, #tpu.memory_space<vmem>>, vector<1x128xf32>
    %c160 = arith.constant 160 : index
    %c0_7 = arith.constant 0 : index
    %6 = vector.load %arg2[%c160, %c0_7] : memref<168x128xf32, #tpu.memory_space<vmem>>, vector<1x128xf32>
    %cst = arith.constant dense<0.000000e+00> : vector<8x128xf32>
    %7 = tpu.matmul %0, %1, %cst {dimension_numbers = #tpu.dot_dimension_numbers<[1], [0], [0], [1], [0, 0, 1, 1], [], []>} : vector<8x8xf32>, vector<8x128xf32>, vector<8x128xf32> -> vector<8x128xf32>
    %8 = vector.broadcast %3 : vector<1x128xf32> to vector<8x128xf32>
    %9 = arith.addf %7, %8 : vector<8x128xf32>
    %cst_8 = arith.constant 0.000000e+00 : f32
    %10 = vector.broadcast %cst_8 : f32 to vector<8x128xf32>
    %11 = arith.maximumf %9, %10 : vector<8x128xf32>
    %cst_9 = arith.constant dense<0.000000e+00> : vector<8x128xf32>
    %12 = tpu.matmul %11, %2, %cst_9 {dimension_numbers = #tpu.dot_dimension_numbers<[1], [0], [0], [1], [0, 0, 1, 1], [], []>} : vector<8x128xf32>, vector<128x128xf32>, vector<8x128xf32> -> vector<8x128xf32>
    %13 = vector.broadcast %4 : vector<1x128xf32> to vector<8x128xf32>
    %14 = arith.addf %12, %13 : vector<8x128xf32>
    %cst_10 = arith.constant 0.000000e+00 : f32
    %15 = vector.broadcast %cst_10 : f32 to vector<8x128xf32>
    %16 = arith.maximumf %14, %15 : vector<8x128xf32>
    %17 = vector.broadcast %5 : vector<1x128xf32> to vector<8x128xf32>
    %18 = arith.mulf %16, %17 : vector<8x128xf32>
    %cst_11 = arith.constant dense<0.000000e+00> : vector<8xf32>
    %19 = vector.multi_reduction <add>, %18, %cst_11 [1] : vector<8x128xf32> to vector<8xf32>
    %20 = vector.shape_cast %19 : vector<8xf32> to vector<8x1xf32>
    %21 = vector.broadcast %20 : vector<8x1xf32> to vector<8x128xf32>
    %22 = vector.broadcast %6 : vector<1x128xf32> to vector<8x128xf32>
    %23 = arith.addf %21, %22 : vector<8x128xf32>
    %24 = arith.negf %23 : vector<8x128xf32>
    %25 = math.exp %24 : vector<8x128xf32>
    %cst_12 = arith.constant 1.000000e+00 : f32
    %26 = vector.broadcast %cst_12 : f32 to vector<8x128xf32>
    %27 = arith.addf %26, %25 : vector<8x128xf32>
    %28 = arith.divf %26, %27 : vector<8x128xf32>
    %c0_13 = arith.constant 0 : index
    %c0_14 = arith.constant 0 : index
    %29 = vector.load %arg3[%c0_13, %c0_14] : memref<8x128xf32, #tpu.memory_space<vmem>>, vector<8x128xf32>
    tpu.vector_store %arg3[%c0_13, %c0_14], %28 {strides = array<i32>} : memref<8x128xf32, #tpu.memory_space<vmem>>, vector<8x128xf32>,
    return
  }
  func.func @transform_0(%arg0: i32) -> (i32, i32) {
    %c0_i32 = arith.constant 0 : i32
    %c0_i32_0 = arith.constant 0 : i32
    return %arg0, %c0_i32 : i32, i32
  }
  func.func @transform_1(%arg0: i32) -> (i32, i32) {
    %c0_i32 = arith.constant 0 : i32
    %c0_i32_0 = arith.constant 0 : i32
    %c0_i32_1 = arith.constant 0 : i32
    return %c0_i32, %c0_i32_0 : i32, i32
  }
  func.func @transform_2(%arg0: i32) -> (i32, i32) {
    %c0_i32 = arith.constant 0 : i32
    %c0_i32_0 = arith.constant 0 : i32
    return %arg0, %c0_i32 : i32, i32
  }
}

</mosaic_0001>

<llo_original>
// kernel: tpu_custom_call.1
$region0: #{tpu_custom_call.1}
  #allocation0 [shape = 'u32[]', space=smem, size = 0x4, offset = 0x4, fixed_abs, tag = 'smem constant byte address 0x4 - core index']
  #allocation1 [shape = 'u32[144,128]{1,0:T(1,128)}', space=vmem, size = 0x12000, scoped, tag = 'internal scratch']
  %s0 = inlined_call_operand.vmem [shape: f32[16,8], index: 0, kind: input, shape index: {}]
  %s1 = inlined_call_operand.hbm [shape: f32[168,128], index: 1, kind: input, shape index: {}]
  %s2 = inlined_call_operand.hbm [shape: f32[16,128], index: 2, kind: output, shape index: {}]
  %s3 = sld [smem:[#allocation0]]
  $region45: #{tpu_custom_call.1} parent=0
    _
  %s5 = ssub.s32 1, %s3
  %s6 = scalar_select 0, %s5, %s3
  $region1: #{tpu_custom_call.1} parent=0
    #allocation2 [shape = 'u8[86016]{0}', space=vmem, size = 0x15000, scoped, tag = 'input window, operand 1, single buffered']
    #allocation3 [shape = 's32[2]{0}', space=sflag, size = 0x8, scoped, tag = 'scoped memory for tpu_custom_call.1']
    #allocation4 [shape = 's32[2]{0}', space=sflag, size = 0x8, scoped, tag = 'scoped memory for tpu_custom_call.1']
    #allocation5 [shape = 'u8[8192]{0}', space=vmem, size = 0x2000, scoped, tag = 'output window, operand 0']
    %7 = vsyncpa [#allocation3], 0
    %8 = vsyncpa [#allocation4], 0
    %s9 = scalar_lea.sflag [#allocation4], 1
    %10 = vsyncpa %s9, 0
    loop: start=0, step=1, limit=4
    $region2: #{tpu_custom_call.1} parent=1 // loop_pre_header
      _
    $region3: #{tpu_custom_call.1} parent=1 // loop_header
      %s12 = sphi 0, %s16
      %p13 = scmp.ge.s32.totalorder %s12, 4
      %s22 = sphi 0, %s24
      %s25 = sphi 0, %s22
      %s26 = sphi 0, %s25
      %s42 = sphi 0, %s26
      %s46 = sphi 0, %s46
      %s48 = sphi 0, %s46
      %s49 = sphi 0, %s48
      %s63 = sphi 0, %s49
      %s69 = sphi 0, %s71
      %s72 = sphi 0, %s69
      %s73 = sphi 0, %s72
      %s89 = sphi 0, %s73
    $region4: #{tpu_custom_call.1} parent=1 // loop_header_branch
      %15 = sbr.rel (%p13) target = $region8
    $region5: #{tpu_custom_call.1} parent=1 // loop_body
      %s17 = ssub.s32 %s12, 1
      %s18 = ssub.s32 %s12, 2
      %s19 = sadd.s32 %s12, 1
      %s20 = ssub.s32 %s12, %s19
      %p21 = scmp.eq.s32.totalorder %s20, 0
      %s23 = sadd.s32 %s22, 1
      %s24 = scalar_select %p21, %s22, %s23
      %p27 = pneg %p21
      %p28 = scmp.eq.s32.totalorder %s12, 1
      %p29 = por %p27, %p28
      %p30 = scmp.ne.s32.totalorder %s22, %s25
      %p31 = scmp.eq.s32.totalorder %s12, 0
      %p32 = por %p30, %p31
      %p33 = scmp.ne.s32.totalorder %s22, %s25
      %p34 = scmp.eq.s32.totalorder %s17, 1
      %p35 = por %p33, %p34
      %p36 = scmp.ne.s32.totalorder %s25, %s26
      %p37 = scmp.eq.s32.totalorder %s17, 0
      %p38 = por %p36, %p37
      %p39 = scmp.ne.s32.totalorder %s25, %s26
      %p40 = scmp.eq.s32.totalorder %s18, 1
      %p41 = por %p39, %p40
      %p43 = scmp.ne.s32.totalorder %s26, %s42
      %p44 = scmp.eq.s32.totalorder %s18, 0
      %p45 = por %p43, %p44
      %s47 = sadd.s32 %s46, 1
      %p50 = scmp.eq.s32.totalorder %s12, 1
      %p51 = scmp.ne.s32.totalorder %s46, %s48
      %p52 = scmp.eq.s32.totalorder %s12, 0
      %p53 = por %p51, %p52
      %p54 = scmp.ne.s32.totalorder %s46, %s48
      %p55 = scmp.eq.s32.totalorder %s17, 1
      %p56 = por %p54, %p55
      %p57 = scmp.ne.s32.totalorder %s48, %s49
      %p58 = scmp.eq.s32.totalorder %s17, 0
      %p59 = por %p57, %p58
      %p60 = scmp.ne.s32.totalorder %s48, %s49
      %p61 = scmp.eq.s32.totalorder %s18, 1
      %p62 = por %p60, %p61
      %p64 = scmp.ne.s32.totalorder %s49, %s63
      %p65 = scmp.eq.s32.totalorder %s18, 0
      %p66 = por %p64, %p65
      %s67 = ssub.s32 %s12, %s19
      %p68 = scmp.eq.s32.totalorder %s67, 0
      %s70 = sadd.s32 %s69, 1
      %s71 = scalar_select %p68, %s69, %s70
      %p74 = pneg %p68
      %p75 = scmp.eq.s32.totalorder %s12, 1
      %p76 = por %p74, %p75
      %p77 = scmp.ne.s32.totalorder %s69, %s72
      %p78 = scmp.eq.s32.totalorder %s12, 0
      %p79 = por %p77, %p78
      %p80 = scmp.ne.s32.totalorder %s69, %s72
      %p81 = scmp.eq.s32.totalorder %s17, 1
      %p82 = por %p80, %p81
      %p83 = scmp.ne.s32.totalorder %s72, %s73
      %p84 = scmp.eq.s32.totalorder %s17, 0
      %p85 = por %p83, %p84
      %p86 = scmp.ne.s32.totalorder %s72, %s73
      %p87 = scmp.eq.s32.totalorder %s18, 1
      %p88 = por %p86, %p87
      %p90 = scmp.ne.s32.totalorder %s73, %s89
      %p91 = scmp.eq.s32.totalorder %s18, 0
      %p92 = por %p90, %p91
      %p93 = scmp.le.s32.totalorder 1, %s12
      %p94 = scmp.lt.s32.totalorder %s12, 3
      %p95 = pnand %p93, %p94
      %p96 = pneg %p95
      // Predicated region
      $region9: #{tpu_custom_call.1} parent=5 // pred_check
        _
      $region10: #{tpu_custom_call.1} parent=5 // pred_check_branch
        %98 = sbr.rel (%p95) target = $region12
      $region11: #{tpu_custom_call.1} parent=5 // pred_region
        %s99 = ssub.s32 %s12, 1
        // Predicated region
        $region13: #{tpu_custom_call.1} parent=11 // pred_check
          %p100 = pneg %p59
        $region14: #{tpu_custom_call.1} parent=11 // pred_check_branch
          %102 = sbr.rel (%p100) target = $region16
        $region15: #{tpu_custom_call.1} parent=11 // pred_region
          %s104 = ssub.s32 2688, 2688
          %105 = vsyncadd [#allocation3], %s104
          %s106 = sshll.u32 [#allocation2], 4
          %s107 = int_to_ptr.vmem [resolvable:$true] %s106
          %112 = dma.hbm_to_vmem [thread:$0]  %s1, 2688, %s107, [#allocation3], 128, 128, 8
        $region16: #{tpu_custom_call.1} parent=11 // pred_fallthru
          _
      $region12: #{tpu_custom_call.1} parent=5 // pred_fallthru
        _
      %p113 = scmp.lt.s32.totalorder %s12, 2
      // Predicated region
      $region17: #{tpu_custom_call.1} parent=5 // pred_check
        %p114 = pneg %p113
      $region18: #{tpu_custom_call.1} parent=5 // pred_check_branch
        %116 = sbr.rel (%p114) target = $region20
      $region19: #{tpu_custom_call.1} parent=5 // pred_region
        // Predicated region
        $region21: #{tpu_custom_call.1} parent=19 // pred_check
          %p117 = pneg %p32
        $region22: #{tpu_custom_call.1} parent=19 // pred_check_branch
          %119 = sbr.rel (%p117) target = $region24
        $region23: #{tpu_custom_call.1} parent=19 // pred_region
          %p120 = scmp.lt.s32.totalorder %s12, 1
          %s121 = scalar_select %p120, %s12, 1
          %s122 = smul.addr %s121, 8
          %s123 = scalar_lea.vmem %s0, %s122
        $region24: #{tpu_custom_call.1} parent=19 // pred_fallthru
          _
      $region20: #{tpu_custom_call.1} parent=5 // pred_fallthru
        _
      %p124 = scmp.le.s32.totalorder 1, %s12
      %p125 = scmp.lt.s32.totalorder %s12, 3
      %p126 = pnand %p124, %p125
      %p127 = pneg %p126
      // Predicated region
      $region25: #{tpu_custom_call.1} parent=5 // pred_check
        _
      $region26: #{tpu_custom_call.1} parent=5 // pred_check_branch
        %129 = sbr.rel (%p126) target = $region28
      $region27: #{tpu_custom_call.1} parent=5 // pred_region
        %s130 = ssub.s32 %s12, 1
        // Predicated region
        $region29: #{tpu_custom_call.1} parent=27 // pred_check
          %p131 = pneg %p59
        $region30: #{tpu_custom_call.1} parent=27 // pred_check_branch
          %133 = sbr.rel (%p131) target = $region32
        $region31: #{tpu_custom_call.1} parent=27 // pred_region
          %134 = dma.done [#allocation3], 2688
        $region32: #{tpu_custom_call.1} parent=27 // pred_fallthru
          _
        %p135 = scmp.lt.s32.totalorder %s17, 1
        %s136 = scalar_select %p135, %s17, 1
        %s137 = smul.addr %s136, 8
        %s138 = scalar_lea.vmem %s0, %s137
        %p139 = pneg %p38
        %p140 = pneg %p35
        %p141 = pneg %p59
        %p142 = pneg %p56
        %p143 = pneg %p85
        %p144 = pneg %p82
        %s145 = sand.u32 %s72, 1
        %s146 = scalar_lea.sflag [#allocation4], %s145
        %s147 = sand.u32 %s72, 1
        %s148 = smul.addr %s147, 8
        %s149 = scalar_lea.vmem [#allocation5], %s148
        %p150 = scmp.lt.s32.totalorder %s17, 1
        %s151 = scalar_select %p150, %s17, 1
        %s152 = smul.addr %s151, 8
        %s153 = scalar_lea.vmem %s0, %s152
        %v154 = vld [vmem:[%s153] sm:$0xff]
        %v155 = vld [vmem:[#allocation2] sm:$0xff]
        %v156 = vld [vmem:[#allocation2 + $0x8] sm:$0xff]
        %v157 = vld [vmem:[#allocation2 + $0x10] sm:$0xff]
        %v158 = vld [vmem:[#allocation2 + $0x18] sm:$0xff]
        %v159 = vld [vmem:[#allocation2 + $0x20] sm:$0xff]
        %v160 = vld [vmem:[#allocation2 + $0x28] sm:$0xff]
        %v161 = vld [vmem:[#allocation2 + $0x30] sm:$0xff]
        %v162 = vld [vmem:[#allocation2 + $0x38] sm:$0xff]
        %v163 = vld [vmem:[#allocation2 + $0x40] sm:$0xff]
        %v164 = vld [vmem:[#allocation2 + $0x48] sm:$0xff]
        %v165 = vld [vmem:[#allocation2 + $0x50] sm:$0xff]
        %v166 = vld [vmem:[#allocation2 + $0x58] sm:$0xff]
        %v167 = vld [vmem:[#allocation2 + $0x60] sm:$0xff]
        %v168 = vld [vmem:[#allocation2 + $0x68] sm:$0xff]
        %v169 = vld [vmem:[#allocation2 + $0x70] sm:$0xff]
        %v170 = vld [vmem:[#allocation2 + $0x78] sm:$0xff]
        %v171 = vld [vmem:[#allocation2 + $0x80] sm:$0xff]
        %v172 = vld [vmem:[#allocation2 + $0x88] sm:$0x1]
        %v173 = vld [vmem:[#allocation2 + $0x90] sm:$0x1]
        %v174 = vld [vmem:[#allocation2 + $0x98] sm:$0x1]
        %v175 = vld [vmem:[#allocation2 + $0xa0] sm:$0x1]
        %v176 = vlaneseq
        %v177 = vshrl.u32 %v176, 7
        %v178 = vsub.s32 0, %v177
        %v179 = vrot.slane %v172, %v178
        %vm180 = vcmask 64512
        %v182 = vsel %vm180, %v154, 0
        %184 = vmatprep.subr.mxu0 0.0
        %185 = vmatpush1.msra.mxu0 %v155
        %186 = vmatprep.subr.mxu0 0.0
        %187 = vmatpush1.msra.mxu0 0.0
        %188 = vmatprep.subr.mxu0 0.0
        %189 = vmatpush1.msra.mxu0 0.0
        %190 = vmatprep.subr.mxu0 0.0
        %191 = vmatpush1.msra.mxu0 0.0
        %192 = vmatprep.subr.mxu0 0.0
        %193 = vmatpush1.msra.mxu0 0.0
        %194 = vmatprep.subr.mxu0 0.0
        %195 = vmatpush1.msra.mxu0 0.0
        %196 = vmatprep.subr.mxu0 0.0
        %197 = vmatpush1.msra.mxu0 0.0
        %198 = vmatprep.subr.mxu0 0.0
        %199 = vmatpush1.msra.mxu0 0.0
        %200 = vmatprep.subr.mxu0 0.0
        %201 = vmatpush1.msra.mxu0 0.0
        %202 = vmatprep.subr.mxu0 0.0
        %203 = vmatpush1.msra.mxu0 0.0
        %204 = vmatprep.subr.mxu0 0.0
        %205 = vmatpush1.msra.mxu0 0.0
        %206 = vmatprep.subr.mxu0 0.0
        %207 = vmatpush1.msra.mxu0 0.0
        %208 = vmatprep.subr.mxu0 0.0
        %209 = vmatpush1.msra.mxu0 0.0
        %210 = vmatprep.subr.mxu0 0.0
        %211 = vmatpush1.msra.mxu0 0.0
        %212 = vmatprep.subr.mxu0 0.0
        %213 = vmatpush1.msra.mxu0 0.0
        %214 = vmatprep.subr.mxu0 0.0
        %215 = vmatpush1.msra.mxu0 0.0
        %216 = vmatprep.subr.mxu0 0.0
        %217 = vmatpush1.msra.mxu0 0.0
        %218 = vmatprep.subr.mxu0 0.0
        %219 = vmatpush1.msra.mxu0 0.0
        %220 = vmatprep.subr.mxu0 0.0
        %221 = vmatpush1.msra.mxu0 0.0
        %222 = vmatprep.subr.mxu0 0.0
        %223 = vmatpush1.msra.mxu0 0.0
        %224 = vmatprep.subr.mxu0 0.0
        %225 = vmatpush1.msra.mxu0 0.0
        %226 = vmatprep.subr.mxu0 0.0
        %227 = vmatpush1.msra.mxu0 0.0
        %228 = vmatprep.subr.mxu0 0.0
        %229 = vmatpush1.msra.mxu0 0.0
        %230 = vmatprep.subr.mxu0 0.0
        %231 = vmatpush1.msra.mxu0 0.0
        %232 = vmatprep.subr.mxu0 0.0
        %233 = vmatpush1.msra.mxu0 0.0
        %234 = vmatprep.subr.mxu0 0.0
        %235 = vmatpush1.msra.mxu0 0.0
        %236 = vmatprep.subr.mxu0 0.0
        %237 = vmatpush1.msra.mxu0 0.0
        %238 = vmatprep.subr.mxu0 0.0
        %239 = vmatpush1.msra.mxu0 0.0
        %240 = vmatprep.subr.mxu0 0.0
        %241 = vmatpush1.msra.mxu0 0.0
        %242 = vmatprep.subr.mxu0 0.0
        %243 = vmatpush1.msra.mxu0 0.0
        %244 = vmatprep.subr.mxu0 0.0
        %245 = vmatpush1.msra.mxu0 0.0
        %246 = vmatprep.subr.mxu0 0.0
        %247 = vmatpush1.msra.mxu0 0.0
        %248 = vmatprep.mubr.f32.mxu0 0.0
        %249 = vmatmul.mubr.f32.gmra.mrb[0].mxu0 %v182
        %v250 = vpop.f32.mrb[0].mxu0
        %v251 = vadd.f32 %v179, %v250
        %v252 = vpop.f32.mrb[0].mxu0
        %253 = vdwg.mxu0
        %v254 = vmax.f32 %v251, 0.0
        %v255 = vlaneseq
        %v256 = vshrl.u32 %v255, 7
        %v257 = vsub.s32 0, %v256
        %v258 = vrot.slane %v173, %v257
        %259 = vmatprep.subr.mxu0 0.0
        %260 = vmatpush1.msra.mxu0 %v156
        %261 = vmatprep.subr.mxu0 0.0
        %262 = vmatpush1.msra.mxu0 %v157
        %263 = vmatprep.subr.mxu0 0.0
        %264 = vmatpush1.msra.mxu0 %v158
        %265 = vmatprep.subr.mxu0 0.0
        %266 = vmatpush1.msra.mxu0 %v159
        %267 = vmatprep.subr.mxu0 0.0
        %268 = vmatpush1.msra.mxu0 %v160
        %269 = vmatprep.subr.mxu0 0.0
        %270 = vmatpush1.msra.mxu0 %v161
        %271 = vmatprep.subr.mxu0 0.0
        %272 = vmatpush1.msra.mxu0 %v162
        %273 = vmatprep.subr.mxu0 0.0
        %274 = vmatpush1.msra.mxu0 %v163
        %275 = vmatprep.subr.mxu0 0.0
        %276 = vmatpush1.msra.mxu0 %v164
        %277 = vmatprep.subr.mxu0 0.0
        %278 = vmatpush1.msra.mxu0 %v165
        %279 = vmatprep.subr.mxu0 0.0
        %280 = vmatpush1.msra.mxu0 %v166
        %281 = vmatprep.subr.mxu0 0.0
        %282 = vmatpush1.msra.mxu0 %v167
        %283 = vmatprep.subr.mxu0 0.0
        %284 = vmatpush1.msra.mxu0 %v168
        %285 = vmatprep.subr.mxu0 0.0
        %286 = vmatpush1.msra.mxu0 %v169
        %287 = vmatprep.subr.mxu0 0.0
        %288 = vmatpush1.msra.mxu0 %v170
        %289 = vmatprep.subr.mxu0 0.0
        %290 = vmatpush1.msra.mxu0 %v171
        %291 = vmatprep.subr.mxu0 0.0
        %292 = vmatpush1.msra.mxu0 0.0
        %293 = vmatprep.subr.mxu0 0.0
        %294 = vmatpush1.msra.mxu0 0.0
        %295 = vmatprep.subr.mxu0 0.0
        %296 = vmatpush1.msra.mxu0 0.0
        %297 = vmatprep.subr.mxu0 0.0
        %298 = vmatpush1.msra.mxu0 0.0
        %299 = vmatprep.subr.mxu0 0.0
        %300 = vmatpush1.msra.mxu0 0.0
        %301 = vmatprep.subr.mxu0 0.0
        %302 = vmatpush1.msra.mxu0 0.0
        %303 = vmatprep.subr.mxu0 0.0
        %304 = vmatpush1.msra.mxu0 0.0
        %305 = vmatprep.subr.mxu0 0.0
        %306 = vmatpush1.msra.mxu0 0.0
        %307 = vmatprep.subr.mxu0 0.0
        %308 = vmatpush1.msra.mxu0 0.0
        %309 = vmatprep.subr.mxu0 0.0
        %310 = vmatpush1.msra.mxu0 0.0
        %311 = vmatprep.subr.mxu0 0.0
        %312 = vmatpush1.msra.mxu0 0.0
        %313 = vmatprep.subr.mxu0 0.0
        %314 = vmatpush1.msra.mxu0 0.0
        %315 = vmatprep.subr.mxu0 0.0
        %316 = vmatpush1.msra.mxu0 0.0
        %317 = vmatprep.subr.mxu0 0.0
        %318 = vmatpush1.msra.mxu0 0.0
        %319 = vmatprep.subr.mxu0 0.0
        %320 = vmatpush1.msra.mxu0 0.0
        %321 = vmatprep.subr.mxu0 0.0
        %322 = vmatpush1.msra.mxu0 0.0
        %323 = vmatprep.mubr.f32.mxu0 0.0
        %324 = vmatmul.mubr.f32.gmra.mrb[0].mxu0 %v254
        %v325 = vpop.f32.mrb[0].mxu0
        %v326 = vadd.f32 %v258, %v325
        %v327 = vpop.f32.mrb[0].mxu0
        %328 = vdwg.mxu0
        %v329 = vmax.f32 %v326, 0.0
        %v330 = vlaneseq
        %v331 = vshrl.u32 %v330, 7
        %v332 = vsub.s32 0, %v331
        %v333 = vrot.slane %v174, %v332
        %v334 = vmul.f32 %v329, %v333
        %335 = vadd.xlane.f32.xlu0 %v334
        %v336 = vpop.xlane.xlu0 %335
        %v337 = vlaneseq
        %v338 = vshrl.u32 %v337, 7
        %v339 = vsub.s32 0, %v338
        %v340 = vrot.slane %v175, %v339
        %v341 = vadd.f32 %v336, %v340
        %v342 = vxor.u32 %v341, 2147483648
        %v343 = vmul.f32 %v342, 1.442695
        %v344 = vpow.pop %v343
        %v345 = vadd.f32 %v344, 1.0
        %v346 = vrcp.pop %v345
        %v347 = vmul.f32 1.0, %v346
        %348 = vst [vmem:[%s149] sm:$0xff] %v347
        %s349 = sand.u32 %s72, 1
        %s350 = scalar_lea.sflag [#allocation4], %s349
        %s351 = sand.u32 %s72, 1
        %s352 = smul.addr %s351, 8
        %s353 = scalar_lea.vmem [#allocation5], %s352
        // Predicated region
        $region33: #{tpu_custom_call.1} parent=27 // pred_check
          %p354 = pneg %p82
        $region34: #{tpu_custom_call.1} parent=27 // pred_check_branch
          %356 = sbr.rel (%p354) target = $region36
        $region35: #{tpu_custom_call.1} parent=27 // pred_region
          %s358 = ssub.s32 128, 128
          %359 = vsyncadd %s350, %s358
          %s360 = smul.addr %s17, 128
          %s361 = scalar_lea.hbm %s2, %s360
          %s363 = sshll.u32 %s353, 4
          %s364 = int_to_ptr.vmem [resolvable:$true] %s363
          %366 = dma.vmem_to_hbm [thread:$0]  %s364, 128, %s361, %s350
        $region36: #{tpu_custom_call.1} parent=27 // pred_fallthru
          _
      $region28: #{tpu_custom_call.1} parent=5 // pred_fallthru
        _
      %p367 = scmp.le.s32.totalorder 2, %s12
      // Predicated region
      $region37: #{tpu_custom_call.1} parent=5 // pred_check
        %p368 = pneg %p367
      $region38: #{tpu_custom_call.1} parent=5 // pred_check_branch
        %370 = sbr.rel (%p368) target = $region40
      $region39: #{tpu_custom_call.1} parent=5 // pred_region
        %s371 = ssub.s32 %s12, 2
        // Predicated region
        $region41: #{tpu_custom_call.1} parent=39 // pred_check
          %p372 = pneg %p88
        $region42: #{tpu_custom_call.1} parent=39 // pred_check_branch
          %374 = sbr.rel (%p372) target = $region44
        $region43: #{tpu_custom_call.1} parent=39 // pred_region
          %s375 = sand.u32 %s73, 1
          %s376 = scalar_lea.sflag [#allocation4], %s375
          %s377 = sand.u32 %s73, 1
          %s378 = smul.addr %s377, 8
          %s379 = scalar_lea.vmem [#allocation5], %s378
          %380 = dma.done %s376, 128
        $region44: #{tpu_custom_call.1} parent=39 // pred_fallthru
          _
      $region40: #{tpu_custom_call.1} parent=5 // pred_fallthru
        _
    $region6: #{tpu_custom_call.1} parent=1 // loop_footer
      %s16 = sadd.s32 1, %s12
    $region7: #{tpu_custom_call.1} parent=1 // loop_footer_branch
      %11 = sbr.rel target = $region3
    $region8: #{tpu_custom_call.1} parent=1 // loop_exit
      _
    %381 = vsyncpa [#allocation3], 1
    %s382 = scalar_lea.sflag [#allocation3], 1
    %383 = vsyncpa %s382, 1
    %384 = vsyncpa [#allocation4], 1
    %s385 = scalar_lea.sflag [#allocation4], 1
    %386 = vsyncpa %s385, 1

</llo_original>
